<compile_context>
chip_gen: v7x
topology: tpu7x:2x2x1
jax: 0.10.0
libtpu: 0.0.40
codegen_flags: <defaults>
</compile_context>

<pallas_src>
import functools

import jax
import jax.numpy as jnp
from jax.experimental import pallas as pl
from jax.experimental.pallas import tpu as pltpu


def _round_up(x, m):
    return (x + m - 1) // m * m


def _regression_head_kernel(x_ref, w_ref, logits_ref, probas_ref, labels_ref):
    x = x_ref[...]                       # [TB, D]
    w = w_ref[...]                       # [D, C]  (already transposed in the wrapper)

    # Linear (no bias): x @ W^T in PyTorch terms.
    logits = jnp.dot(x, w, preferred_element_type=jnp.float32)   # [TB, C]
    logits_ref[...] = logits.astype(logits_ref.dtype)

    # Numerically stable softmax over the class dim.
    m = jnp.max(logits, axis=-1, keepdims=True)                  # [TB, 1]
    e = jnp.exp(logits - m)
    denom = jnp.sum(e, axis=-1, keepdims=True)
    probas_ref[...] = (e / denom).astype(probas_ref.dtype)

    # Argmax (first occurrence on ties), computed on f32 logits.
    c = logits.shape[-1]
    ids = jax.lax.broadcasted_iota(jnp.int32, logits.shape, dimension=1)
    is_max = logits == m
    labels = jnp.min(jnp.where(is_max, ids, jnp.int32(c)), axis=-1, keepdims=True)
    labels_ref[...] = labels.astype(labels_ref.dtype)


def _pick_batch_tile(batch, d, c, *, tb_max=4096, min_grid_steps=4,
                     budget_bytes=24 * 1024 * 1024):
    """Pick a batch tile: as large as fits the VMEM budget (double-buffered), but
    keeping >= min_grid_steps grid steps (v7x megacore) and (nearly) dividing B."""
    def footprint(tb):
        return (2 * tb * d * 4            # x tile (double-buffered)
                + 2 * 2 * tb * c * 4      # logits + probas tiles (double-buffered)
                + 2 * tb * 4              # labels tile (double-buffered)
                + 2 * d * c * 4)          # resident weight
    tb = tb_max
    while tb > 8 and footprint(tb) > budget_bytes:
        tb //= 2
    n_steps = max(min_grid_steps, pl.cdiv(batch, tb))
    tb = _round_up(pl.cdiv(batch, n_steps), 8)
    return max(8, min(tb, _round_up(batch, 8)))


def _regression_head_xla(x, weight):
    logits = jnp.dot(x, weight.T, preferred_element_type=jnp.float32)
    probas = jax.nn.softmax(logits, axis=-1)
    labels = jnp.argmax(logits, axis=-1).astype(jnp.int32)
    return logits, probas, labels


def regression_head(x, weight, *, batch_tile=None, force_pallas=False,
                    small_batch_threshold=64, vmem_limit_bytes=32 * 1024 * 1024):
    """x: [B, D] float; weight: [C, D] (PyTorch nn.Linear layout, bias=False).

    Returns (logits [B, C] f32, probas [B, C] f32, labels [B] i32) — the fields
    RegressionHead.forward fills in ClassificationOutput.
    """
    B, D = x.shape
    C, D2 = weight.shape
    assert D == D2, (D, D2)

    # Tiny-shape fast path: fixed pallas_call overhead dwarfs the work.
    if not force_pallas and B <= small_batch_threshold:
        return _regression_head_xla(x, weight)

    w_t = weight.T                                   # [D, C], one-time tiny relayout

    TB = batch_tile if batch_tile is not None else _pick_batch_tile(B, D, C)
    TB = max(8, min(_round_up(TB, 8), _round_up(B, 8)))
    grid = (pl.cdiv(B, TB),)

    logits, probas, labels = pl.pallas_call(
        _regression_head_kernel,
        out_shape=(
            jax.ShapeDtypeStruct((B, C), jnp.float32),
            jax.ShapeDtypeStruct((B, C), jnp.float32),
            jax.ShapeDtypeStruct((B, 1), jnp.int32),
        ),
        grid=grid,
        in_specs=[
            pl.BlockSpec((TB, D), lambda i: (i, 0)),     # batch tile of x
            pl.BlockSpec((D, C), lambda i: (0, 0)),      # weight, resident across grid
        ],
        out_specs=(
            pl.BlockSpec((TB, C), lambda i: (i, 0)),
            pl.BlockSpec((TB, C), lambda i: (i, 0)),
            pl.BlockSpec((TB, 1), lambda i: (i, 0)),
        ),
        compiler_params=pltpu.CompilerParams(
            dimension_semantics=("parallel",),           # megacore-shard batch tiles (v7x)
            vmem_limit_bytes=vmem_limit_bytes,
        ),
    )(x, w_t)

    return logits, probas, labels[:, 0]


if __name__ == "__main__":
    def _check(B, D, C, key, batch_tile=None, force_pallas=False):
        kx, kw = jax.random.split(key)
        x = jax.random.normal(kx, (B, D), dtype=jnp.float32)
        # Deterministic synthetic nn.Linear weight [num_classes, latent_dim], no bias.
        weight = jax.random.normal(kw, (C, D), dtype=jnp.float32) * (D ** -0.5)

        logits, probas, labels = regression_head(
            x, weight, batch_tile=batch_tile, force_pallas=force_pallas)
        jax.block_until_ready((logits, probas, labels))

        ref_logits = x @ weight.T
        ref_probas = jax.nn.softmax(ref_logits, axis=-1)
        ref_labels = jnp.argmax(ref_logits, axis=-1)
        assert logits.shape == (B, C) and probas.shape == (B, C) and labels.shape == (B,)
        assert jnp.allclose(logits, ref_logits, atol=1e-4, rtol=1e-4), "logits mismatch"
        assert jnp.allclose(probas, ref_probas, atol=1e-5, rtol=1e-4), "probas mismatch"
        assert jnp.all(labels == ref_labels), "labels mismatch"

    key = jax.random.PRNGKey(0)
    k1, k2 = jax.random.split(key)

    # Module-implied small shapes (batch=8, latent_dim=32, num_classes=16):
    #  - Pallas path forced once to exercise the kernel at the shipped shape.
    _check(8, 32, 16, k1, force_pallas=True)
    #  - Default dispatch hits the XLA fast path at this size.
    _check(8, 32, 16, k1)
    # Larger ragged batch: multi-step grid + partial tail tile, auto tile pick.
    _check(400, 32, 16, k2)

    print("KERNEL_OK")
</pallas_src>

<mosaic_0001>
module attributes {stable_mosaic.version = 11 : i64} {
  func.func @_regression_head_kernel(%arg0: i32, %arg1: memref<8x32xf32, #tpu.memory_space<vmem>>, %arg2: memref<32x16xf32, #tpu.memory_space<vmem>>, %arg3: memref<8x16xf32, #tpu.memory_space<vmem>>, %arg4: memref<8x16xf32, #tpu.memory_space<vmem>>, %arg5: memref<8x1xi32, #tpu.memory_space<vmem>>) attributes {dimension_semantics = [#tpu.dimension_semantics<parallel>], iteration_bounds = array<i64: 1>, scalar_prefetch = 0 : i64, scratch_operands = 0 : i64, tpu.core_type = #tpu.core_type<tc>, window_params = [{transform_indices = @transform_0, window_bounds = array<i64: 8, 32>}, {pipeline_mode = #tpu.pipeline_mode<synchronous>, transform_indices = @transform_1, window_bounds = array<i64: 32, 16>}, {transform_indices = @transform_2, window_bounds = array<i64: 8, 16>}, {transform_indices = @transform_3, window_bounds = array<i64: 8, 16>}, {transform_indices = @transform_4, window_bounds = array<i64: 8, 1>}]} {
    %c0 = arith.constant 0 : index
    %c0_0 = arith.constant 0 : index
    %0 = vector.load %arg1[%c0, %c0_0] : memref<8x32xf32, #tpu.memory_space<vmem>>, vector<8x32xf32>
    %c0_1 = arith.constant 0 : index
    %c0_2 = arith.constant 0 : index
    %1 = vector.load %arg2[%c0_1, %c0_2] : memref<32x16xf32, #tpu.memory_space<vmem>>, vector<32x16xf32>
    %cst = arith.constant dense<0.000000e+00> : vector<8x16xf32>
    %2 = tpu.matmul %0, %1, %cst {dimension_numbers = #tpu.dot_dimension_numbers<[1], [0], [0], [1], [0, 0, 1, 1], [], []>} : vector<8x32xf32>, vector<32x16xf32>, vector<8x16xf32> -> vector<8x16xf32>
    %c0_3 = arith.constant 0 : index
    %c0_4 = arith.constant 0 : index
    %3 = vector.load %arg3[%c0_3, %c0_4] : memref<8x16xf32, #tpu.memory_space<vmem>>, vector<8x16xf32>
    tpu.vector_store %arg3[%c0_3, %c0_4], %2 {strides = array<i32>} : memref<8x16xf32, #tpu.memory_space<vmem>>, vector<8x16xf32>,
    %cst_5 = arith.constant dense<0xFF800000> : vector<8xf32>
    %4 = vector.multi_reduction <maximumf>, %2, %cst_5 [1] : vector<8x16xf32> to vector<8xf32>
    %5 = vector.shape_cast %4 : vector<8xf32> to vector<8x1xf32>
    %6 = vector.broadcast %5 : vector<8x1xf32> to vector<8x16xf32>
    %7 = arith.subf %2, %6 : vector<8x16xf32>
    %8 = math.exp %7 : vector<8x16xf32>
    %cst_6 = arith.constant dense<0.000000e+00> : vector<8xf32>
    %9 = vector.multi_reduction <add>, %8, %cst_6 [1] : vector<8x16xf32> to vector<8xf32>
    %10 = vector.shape_cast %9 : vector<8xf32> to vector<8x1xf32>
    %11 = vector.broadcast %10 : vector<8x1xf32> to vector<8x16xf32>
    %12 = arith.divf %8, %11 : vector<8x16xf32>
    %c0_7 = arith.constant 0 : index
    %c0_8 = arith.constant 0 : index
    %13 = vector.load %arg4[%c0_7, %c0_8] : memref<8x16xf32, #tpu.memory_space<vmem>>, vector<8x16xf32>
    tpu.vector_store %arg4[%c0_7, %c0_8], %12 {strides = array<i32>} : memref<8x16xf32, #tpu.memory_space<vmem>>, vector<8x16xf32>,
    %14 = tpu.iota {dimensions = array<i32: 1>} : vector<8x16xi32>
    %15 = vector.broadcast %5 : vector<8x1xf32> to vector<8x16xf32>
    %16 = arith.cmpf oeq, %2, %15 : vector<8x16xf32>
    %c16_i32 = arith.constant 16 : i32
    %17 = vector.broadcast %c16_i32 : i32 to vector<8x16xi32>
    %18 = arith.select %16, %14, %17 : vector<8x16xi1>, vector<8x16xi32>
    %cst_9 = arith.constant dense<2147483647> : vector<8xi32>
    %19 = vector.multi_reduction <minsi>, %18, %cst_9 [1] : vector<8x16xi32> to vector<8xi32>
    %20 = vector.shape_cast %19 : vector<8xi32> to vector<8x1xi32>
    %c0_10 = arith.constant 0 : index
    %c0_11 = arith.constant 0 : index
    %21 = vector.load %arg5[%c0_10, %c0_11] : memref<8x1xi32, #tpu.memory_space<vmem>>, vector<8x1xi32>
    tpu.vector_store %arg5[%c0_10, %c0_11], %20 {strides = array<i32>} : memref<8x1xi32, #tpu.memory_space<vmem>>, vector<8x1xi32>,
    return
  }
  func.func @transform_0(%arg0: i32) -> (i32, i32) {
    %c0_i32 = arith.constant 0 : i32
    %c0_i32_0 = arith.constant 0 : i32
    return %arg0, %c0_i32 : i32, i32
  }
  func.func @transform_1(%arg0: i32) -> (i32, i32) {
    %c0_i32 = arith.constant 0 : i32
    %c0_i32_0 = arith.constant 0 : i32
    %c0_i32_1 = arith.constant 0 : i32
    return %c0_i32, %c0_i32_0 : i32, i32
  }
  func.func @transform_2(%arg0: i32) -> (i32, i32) {
    %c0_i32 = arith.constant 0 : i32
    %c0_i32_0 = arith.constant 0 : i32
    return %arg0, %c0_i32 : i32, i32
  }
  func.func @transform_3(%arg0: i32) -> (i32, i32) {
    %c0_i32 = arith.constant 0 : i32
    %c0_i32_0 = arith.constant 0 : i32
    return %arg0, %c0_i32 : i32, i32
  }
  func.func @transform_4(%arg0: i32) -> (i32, i32) {
    %c0_i32 = arith.constant 0 : i32
    %c0_i32_0 = arith.constant 0 : i32
    return %arg0, %c0_i32 : i32, i32
  }
}

</mosaic_0001>

<llo_original>
// kernel: tpu_custom_call.1
$region0: #{tpu_custom_call.1}
  #allocation0 [shape = 'u32[]', space=smem, size = 0x4, offset = 0x4, fixed_abs, tag = 'smem constant byte address 0x4 - core index']
  #allocation1 [shape = 'u32[144,128]{1,0:T(1,128)}', space=vmem, size = 0x12000, scoped, tag = 'internal scratch']
  %s0 = inlined_call_operand.vmem [shape: f32[8,32], index: 0, kind: input, shape index: {}]
  %s1 = inlined_call_operand.vmem [shape: f32[32,16], index: 1, kind: input, shape index: {}]
  %s2 = inlined_call_operand.hbm [shape: f32[8,16], index: 2, kind: output, shape index: {0}]
  %s3 = inlined_call_operand.hbm [shape: f32[8,16], index: 3, kind: output, shape index: {1}]
  %s4 = inlined_call_operand.vmem [shape: s32[8,1], index: 4, kind: output, shape index: {2}]
  %5 = xla_tuple %s2, %s3, %s4
  %s6 = sld [smem:[#allocation0]]
  $region34: #{tpu_custom_call.1} parent=0
    _
  %s8 = ssub.s32 1, %s6
  %s9 = scalar_select 0, %s8, %s6
  $region1: #{tpu_custom_call.1} parent=0
    #allocation2 [shape = 'u8[4096]{0}', space=vmem, size = 0x1000, scoped, tag = 'output window, operand 0, single buffered']
    #allocation3 [shape = 's32[1]{0}', space=sflag, size = 0x4, scoped, tag = 'scoped memory for tpu_custom_call.1']
    #allocation4 [shape = 'u8[4096]{0}', space=vmem, size = 0x1000, scoped, tag = 'output window, operand 1, single buffered']
    #allocation5 [shape = 's32[1]{0}', space=sflag, size = 0x4, scoped, tag = 'scoped memory for tpu_custom_call.1']
    %10 = vsyncpa [#allocation3], 0
    %11 = vsyncpa [#allocation5], 0
    // Predicated region
    $region2: #{tpu_custom_call.1} parent=1 // pred_check
      _
    $region3: #{tpu_custom_call.1} parent=1 // pred_check_branch
      %13 = sbr.rel (0) target = $region5
    $region4: #{tpu_custom_call.1} parent=1 // pred_region
      _
    $region5: #{tpu_custom_call.1} parent=1 // pred_fallthru
      _
    // Predicated region
    $region6: #{tpu_custom_call.1} parent=1 // pred_check
      _
    $region7: #{tpu_custom_call.1} parent=1 // pred_check_branch
      %15 = sbr.rel (0) target = $region9
    $region8: #{tpu_custom_call.1} parent=1 // pred_region
      _
    $region9: #{tpu_custom_call.1} parent=1 // pred_fallthru
      _
    %v16 = vld [vmem:[%s0] sm:$0xff]
    %v17 = vld [vmem:[%s1] sm:$0xff]
    %v18 = vld [vmem:[%s1 + $0x8] sm:$0xff]
    %v19 = vld [vmem:[%s1 + $0x10] sm:$0xff]
    %v20 = vld [vmem:[%s1 + $0x18] sm:$0xff]
    %vm21 = vcmask 261120
    %v23 = vsel %vm21, %v16, 0
    %25 = vmatprep.subr.mxu0 0.0
    %26 = vmatpush1.msra.mxu0 %v17
    %27 = vmatprep.subr.mxu0 0.0
    %28 = vmatpush1.msra.mxu0 %v18
    %29 = vmatprep.subr.mxu0 0.0
    %30 = vmatpush1.msra.mxu0 %v19
    %31 = vmatprep.subr.mxu0 0.0
    %32 = vmatpush1.msra.mxu0 %v20
    %33 = vmatprep.subr.mxu0 0.0
    %34 = vmatpush1.msra.mxu0 0.0
    %35 = vmatprep.subr.mxu0 0.0
    %36 = vmatpush1.msra.mxu0 0.0
    %37 = vmatprep.subr.mxu0 0.0
    %38 = vmatpush1.msra.mxu0 0.0
    %39 = vmatprep.subr.mxu0 0.0
    %40 = vmatpush1.msra.mxu0 0.0
    %41 = vmatprep.subr.mxu0 0.0
    %42 = vmatpush1.msra.mxu0 0.0
    %43 = vmatprep.subr.mxu0 0.0
    %44 = vmatpush1.msra.mxu0 0.0
    %45 = vmatprep.subr.mxu0 0.0
    %46 = vmatpush1.msra.mxu0 0.0
    %47 = vmatprep.subr.mxu0 0.0
    %48 = vmatpush1.msra.mxu0 0.0
    %49 = vmatprep.subr.mxu0 0.0
    %50 = vmatpush1.msra.mxu0 0.0
    %51 = vmatprep.subr.mxu0 0.0
    %52 = vmatpush1.msra.mxu0 0.0
    %53 = vmatprep.subr.mxu0 0.0
    %54 = vmatpush1.msra.mxu0 0.0
    %55 = vmatprep.subr.mxu0 0.0
    %56 = vmatpush1.msra.mxu0 0.0
    %57 = vmatprep.subr.mxu0 0.0
    %58 = vmatpush1.msra.mxu0 0.0
    %59 = vmatprep.subr.mxu0 0.0
    %60 = vmatpush1.msra.mxu0 0.0
    %61 = vmatprep.subr.mxu0 0.0
    %62 = vmatpush1.msra.mxu0 0.0
    %63 = vmatprep.subr.mxu0 0.0
    %64 = vmatpush1.msra.mxu0 0.0
    %65 = vmatprep.subr.mxu0 0.0
    %66 = vmatpush1.msra.mxu0 0.0
    %67 = vmatprep.subr.mxu0 0.0
    %68 = vmatpush1.msra.mxu0 0.0
    %69 = vmatprep.subr.mxu0 0.0
    %70 = vmatpush1.msra.mxu0 0.0
    %71 = vmatprep.subr.mxu0 0.0
    %72 = vmatpush1.msra.mxu0 0.0
    %73 = vmatprep.subr.mxu0 0.0
    %74 = vmatpush1.msra.mxu0 0.0
    %75 = vmatprep.subr.mxu0 0.0
    %76 = vmatpush1.msra.mxu0 0.0
    %77 = vmatprep.subr.mxu0 0.0
    %78 = vmatpush1.msra.mxu0 0.0
    %79 = vmatprep.subr.mxu0 0.0
    %80 = vmatpush1.msra.mxu0 0.0
    %81 = vmatprep.subr.mxu0 0.0
    %82 = vmatpush1.msra.mxu0 0.0
    %83 = vmatprep.subr.mxu0 0.0
    %84 = vmatpush1.msra.mxu0 0.0
    %85 = vmatprep.subr.mxu0 0.0
    %86 = vmatpush1.msra.mxu0 0.0
    %87 = vmatprep.subr.mxu0 0.0
    %88 = vmatpush1.msra.mxu0 0.0
    %89 = vmatprep.mubr.f32.mxu0 0.0
    %90 = vmatmul.mubr.f32.gmra.mrb[0].mxu0 %v23
    %v91 = vpop.f32.mrb[0].mxu0
    %v92 = vadd.f32 0.0, %v91
    %v93 = vpop.f32.mrb[0].mxu0
    %94 = vdwg.mxu0
    %vm95 = vcmask 130048
    %96 = vst.msk [vmem:[#allocation2] sm:$0xff] %vm95, %v92
    %v97 = vsel %vm95, %v92, -inf
    %98 = vmax.xlane.f32.xlu0 %v97
    %v99 = vpop.xlane.xlu0 %98
    %v100 = vsub.f32 %v92, %v99
    %v101 = vmul.f32 %v100, 1.442695
    %v102 = vpow.pop %v101
    %v103 = vsel %vm95, %v102, 0.0
    %104 = vadd.xlane.f32.xlu0 %v103
    %v105 = vpop.xlane.xlu0 %104
    %v106 = vrcp.pop %v105
    %v107 = vmul.f32 %v102, %v106
    %108 = vst.msk [vmem:[#allocation4] sm:$0xff] %vm95, %v107
    %v109 = vlaneseq
    %v110 = vand.u32 %v109, 127
    %vm111 = vcmp.eq.f32.partialorder %v92, %v99
    %v112 = vsel %vm111, %v110, 16
    %v113 = vsel %vm95, %v112, 2147483647
    %v114 = vand.u32 %v113, 65535
    %v115 = vshra.s32 %v113, 16
    %v116 = vcvt.s32.f32 %v114
    %v117 = vcvt.s32.f32 %v115
    %118 = vmin.xlane.f32.xlu0 %v117
    %v119 = vpop.xlane.xlu0 %118
    %vm120 = vcmp.eq.f32.partialorder %v117, %v119
    %v121 = vsel %vm120, %v116, inf
    %122 = vmin.xlane.f32.xlu0 %v121
    %v123 = vpop.xlane.xlu0 %122
    %v124 = vcvt.f32.s32 %v123
    %v125 = vcvt.f32.s32 %v119
    %v126 = vshll.u32 %v125, 16
    %v127 = vadd.s32 %v126, %v124
    %vm128 = vcmask 7168
    %129 = vst.msk [vmem:[%s4] sm:$0xff] %vm128, %v127
    // Predicated region
    $region10: #{tpu_custom_call.1} parent=1 // pred_check
      _
    $region11: #{tpu_custom_call.1} parent=1 // pred_check_branch
      %131 = sbr.rel (0) target = $region13
    $region12: #{tpu_custom_call.1} parent=1 // pred_region
      %s133 = ssub.s32 128, 128
      %134 = vsyncadd [#allocation3], %s133
      %s136 = sshll.u32 [#allocation2], 4
      %s137 = int_to_ptr.vmem [resolvable:$true] %s136
      %139 = dma.vmem_to_hbm [thread:$0]  %s137, 128, %s2, [#allocation3]
    $region13: #{tpu_custom_call.1} parent=1 // pred_fallthru
      _
    // Predicated region
    $region14: #{tpu_custom_call.1} parent=1 // pred_check
      _
    $region15: #{tpu_custom_call.1} parent=1 // pred_check_branch
      %141 = sbr.rel (0) target = $region17
    $region16: #{tpu_custom_call.1} parent=1 // pred_region
      %s143 = ssub.s32 128, 128
      %144 = vsyncadd [#allocation5], %s143
      %s146 = sshll.u32 [#allocation4], 4
      %s147 = int_to_ptr.vmem [resolvable:$true] %s146
      %149 = dma.vmem_to_hbm [thread:$0]  %s147, 128, %s3, [#allocation5]
    $region17: #{tpu_custom_call.1} parent=1 // pred_fallthru
      _
    // Predicated region
    $region18: #{tpu_custom_call.1} parent=1 // pred_check
      _
    $region19: #{tpu_custom_call.1} parent=1 // pred_check_branch
      %151 = sbr.rel (0) target = $region21
    $region20: #{tpu_custom_call.1} parent=1 // pred_region
      _
    $region21: #{tpu_custom_call.1} parent=1 // pred_fallthru
      _
    // Predicated region
    $region22: #{tpu_custom_call.1} parent=1 // pred_check
      _
    $region23: #{tpu_custom_call.1} parent=1 // pred_check_branch
      %153 = sbr.rel (0) target = $region25
    $region24: #{tpu_custom_call.1} parent=1 // pred_region
      %154 = dma.done [#allocation3], 128
    $region25: #{tpu_custom_call.1} parent=1 // pred_fallthru
      _
    // Predicated region
    $region26: #{tpu_custom_call.1} parent=1 // pred_check
      _
    $region27: #{tpu_custom_call.1} parent=1 // pred_check_branch
      %156 = sbr.rel (0) target = $region29
    $region28: #{tpu_custom_call.1} parent=1 // pred_region
      %157 = dma.done [#allocation5], 128
    $region29: #{tpu_custom_call.1} parent=1 // pred_fallthru
      _
    // Predicated region
    $region30: #{tpu_custom_call.1} parent=1 // pred_check
      _
    $region31: #{tpu_custom_call.1} parent=1 // pred_check_branch
      %159 = sbr.rel (0) target = $region33
    $region32: #{tpu_custom_call.1} parent=1 // pred_region
      _
    $region33: #{tpu_custom_call.1} parent=1 // pred_fallthru
      _
    %160 = vsyncpa [#allocation3], 1
    %161 = vsyncpa [#allocation5], 1

</llo_original>
